<compile_context>
chip_gen: v7x
topology: tpu7x:2x2x1
jax: 0.10.0
libtpu: 0.0.40
codegen_flags: <defaults>
</compile_context>

<pallas_src>
import math

import numpy as np
import jax
import jax.numpy as jnp
from jax.experimental import pallas as pl
from jax.experimental.pallas import tpu as pltpu

# ----------------------------------------------------------------------------
# Configuration (plays the role of `configs` in the PyTorch module)
# ----------------------------------------------------------------------------
SEQ_LEN = 16          # configs.seq_len (== d_model of the attention layer)
N_HEADS = 4           # configs.n_heads (must divide SEQ_LEN)
BATCH = 2
NUM_INPUTS = 1        # TCN input channels
NUM_CHANNELS = (4, 1) # TCN layer output channels
KERNEL_SIZE = 2
LANES = 128           # time occupies lanes [0, SEQ_LEN); the rest is zero padding
# configs.activation == "relu"; dropout (TCN & attention) is identity at inference.

assert SEQ_LEN % N_HEADS == 0
assert SEQ_LEN + 2 < LANES          # room for the dilated shifts
# The attention fold below (softmax over a single key == 1) is only valid because the
# attention "sequence" axis is the last TCN channel axis and has length 1:
assert NUM_CHANNELS[-1] == 1, "attention fold requires NUM_CHANNELS[-1] == 1"


# ----------------------------------------------------------------------------
# Static layout of the scalar parameter slab (SMEM).  Conv taps are raveled
# (out, in, k) with k=0 -> tap at t-dilation, k=1 -> tap at t.
# ----------------------------------------------------------------------------
def _build_offsets():
    off, n = {}, 0

    def add(name, size):
        nonlocal n
        off[name] = n
        n += size

    c0, c1 = NUM_CHANNELS
    add("b1_w1", c0 * NUM_INPUTS * KERNEL_SIZE)   # Conv1d(1 -> 4, k=2, d=1)
    add("b1_b1", c0)
    add("b1_w2", c0 * c0 * KERNEL_SIZE)           # Conv1d(4 -> 4, k=2, d=1)
    add("b1_b2", c0)
    add("b1_wd", c0 * NUM_INPUTS)                 # 1x1 residual Conv1d(1 -> 4)
    add("b1_bd", c0)
    add("b2_w1", c1 * c0 * KERNEL_SIZE)           # Conv1d(4 -> 1, k=2, d=2)
    add("b2_b1", c1)
    add("b2_w2", c1 * c1 * KERNEL_SIZE)           # Conv1d(1 -> 1, k=2, d=2)
    add("b2_b2", c1)
    add("b2_wd", c1 * c0)                         # 1x1 residual Conv1d(4 -> 1)
    add("b2_bd", c1)
    add("b_full", 1)                              # folded (bv@Wo.T + bo)@Wout.T + bout
    return off, n


OFF, N_SCALARS = _build_offsets()


# ----------------------------------------------------------------------------
# The Pallas kernel: whole forward pass for the whole batch, one invocation.
# Activation layout: (out_channel * BATCH + batch) on sublanes, time on lanes.
# ----------------------------------------------------------------------------
def tcn_attention_kernel(x_ref, wvec_ref, scal_ref, out_ref):
    f32 = jnp.float32
    B = BATCH
    h0 = x_ref[...]          # (B, 128): row b = x[b, 0, :], lanes >= L are zero
    wvec = wvec_ref[...]     # (1, 128): folded head weights in lanes [0, L), else zero

    lane = jax.lax.broadcasted_iota(jnp.int32, (1, LANES), 1)
    causal_mask = {d: (lane >= d).astype(f32) for d in (1, 2)}

    def s(i):                # scalar parameter from SMEM (static index)
        return scal_ref[i]

    def shift(h, d):
        # hs[:, t] = h[:, t-d]; zero for t < d (causal left pad).  The mask also kills
        # the rotate wrap-around (lanes 128-d..127 land exactly on lanes < d).
        return pltpu.roll(h, shift=d, axis=1) * causal_mask[d]

    def chan(h, c):
        return h[c * B:(c + 1) * B, :]            # (B, 128) slice of input channel c

    def conv(h, d, w_off, b_off, c_in, c_out):
        # Causal dilated Conv1d(c_in -> c_out, k=2, dilation=d) + chomp, unrolled on
        # the VPU as scalar * vector multiply-adds (no MXU round trips).
        hs = shift(h, d)
        h_c = [chan(h, c) for c in range(c_in)]
        hs_c = [chan(hs, c) for c in range(c_in)]
        rows = []
        for o in range(c_out):
            acc = None
            for c in range(c_in):
                base = w_off + (o * c_in + c) * KERNEL_SIZE
                term = s(base) * hs_c[c] + s(base + 1) * h_c[c]
                acc = term if acc is None else acc + term
            rows.append(acc + s(b_off + o))
        return rows[0] if c_out == 1 else jnp.concatenate(rows, axis=0)

    def conv1x1(h, w_off, b_off, c_in, c_out):
        # Residual "downsample" Conv1d(c_in -> c_out, kernel_size=1), also on the VPU.
        h_c = [chan(h, c) for c in range(c_in)]
        rows = []
        for o in range(c_out):
            acc = None
            for c in range(c_in):
                term = s(w_off + o * c_in + c) * h_c[c]
                acc = term if acc is None else acc + term
            rows.append(acc + s(b_off + o))
        return rows[0] if c_out == 1 else jnp.concatenate(rows, axis=0)

    def tcn_block(h, d, pre, c_in, c_out):
        # [weight-normed causal conv -> chomp -> relu -> dropout] x 2 + 1x1 residual,
        # final relu.  (weight_norm = reparameterization; dropout = identity in eval.)
        c1 = jnp.maximum(conv(h, d, OFF[pre + "_w1"], OFF[pre + "_b1"], c_in, c_out), 0.0)
        c2 = jnp.maximum(conv(c1, d, OFF[pre + "_w2"], OFF[pre + "_b2"], c_out, c_out), 0.0)
        res = conv1x1(h, OFF[pre + "_wd"], OFF[pre + "_bd"], c_in, c_out)
        return jnp.maximum(c2 + res, 0.0)

    o1 = tcn_block(h0, 1, "b1", NUM_INPUTS, NUM_CHANNELS[0])        # (4*B, 128)
    o2 = tcn_block(o1, 2, "b2", NUM_CHANNELS[0], NUM_CHANNELS[1])   # (B, 128)

    # AttentionLayer(FullAttention(mask_flag=False), d_model=L, n_heads=H): the attention
    # sequence axis is the last TCN channel axis (length 1), so softmax over the single
    # key is exactly 1 and attention out == out_proj(value_proj(o2)).  Q/K projections
    # are mathematically dead; V / out_projection / Linear(L, 1) head are folded
    # host-side into wvec (zero past lane L-1 -> also masks padded-lane garbage) and a
    # scalar bias.  The head is an elementwise multiply + per-batch lane reduction.
    pred = jnp.sum(o2 * wvec, axis=1, keepdims=True) + s(OFF["b_full"])   # (B, 1)
    out_ref[...] = jnp.broadcast_to(pred, (B, LANES))


# ----------------------------------------------------------------------------
# Parameter initialization (deterministic, shapes from the module __init__)
# ----------------------------------------------------------------------------
def init_params(key):
    keys = iter(jax.random.split(key, 32))

    def nrm(shape, scale=0.1):
        return scale * jax.random.normal(next(keys), shape, dtype=jnp.float32)

    L = SEQ_LEN
    p = {}
    # TCN block 1: Conv1d(1, 4, k=2, d=1) x2 + downsample Conv1d(1, 4, 1)
    p["b1_w1"] = nrm((4, 1, 2)); p["b1_b1"] = nrm((4,))
    p["b1_w2"] = nrm((4, 4, 2)); p["b1_b2"] = nrm((4,))
    p["b1_wd"] = nrm((4, 1, 1)); p["b1_bd"] = nrm((4,))
    # TCN block 2: Conv1d(4, 1, k=2, d=2) then Conv1d(1, 1, k=2, d=2) + downsample Conv1d(4, 1, 1)
    p["b2_w1"] = nrm((1, 4, 2)); p["b2_b1"] = nrm((1,))
    p["b2_w2"] = nrm((1, 1, 2)); p["b2_b2"] = nrm((1,))
    p["b2_wd"] = nrm((1, 4, 1)); p["b2_bd"] = nrm((1,))
    # Attention projections: Linear(L, L) x4 (PyTorch weight layout (out, in))
    for n in ("q", "k", "v", "o"):
        p[f"w{n}"] = nrm((L, L)); p[f"b{n}"] = nrm((L,))
    # Output head: Linear(L, 1)
    p["w_out"] = nrm((1, L)); p["b_out"] = nrm((1,))
    return p


# ----------------------------------------------------------------------------
# Host-side packing: 26 small parameters -> one SMEM scalar slab + one (1,128) vector.
# (Done once; folding in float64 so it adds no extra error.)
# ----------------------------------------------------------------------------
def pack_params(p):
    def npf(a):
        return np.asarray(a, np.float64)

    scal = np.zeros(N_SCALARS, np.float64)

    def put(name, arr):
        a = np.ravel(npf(arr))          # (out, in, k) ravel matches kernel indexing
        scal[OFF[name]:OFF[name] + a.size] = a

    for name in ("b1_w1", "b1_b1", "b1_w2", "b1_b2", "b1_wd", "b1_bd",
                 "b2_w1", "b2_b1", "b2_w2", "b2_b2", "b2_wd", "b2_bd"):
        put(name, p[name])

    # Fold V / out_projection / output head (softmax over a single key == identity):
    #   pred = o2 @ (Wv.T @ Wo.T @ Wout.T) + (bv @ Wo.T @ Wout.T + bo @ Wout.T + bout)
    wv, wo, wout = npf(p["wv"]), npf(p["wo"]), npf(p["w_out"])
    bv, bo, bout = npf(p["bv"]), npf(p["bo"]), npf(p["b_out"])
    w_full = wv.T @ wo.T @ wout.T                      # (L, 1)
    b_full = bv @ wo.T @ wout.T + bo @ wout.T + bout   # (1,)
    scal[OFF["b_full"]] = b_full[0]

    wvec = np.zeros((1, LANES), np.float64)
    wvec[0, :SEQ_LEN] = w_full[:, 0]

    return {"scal": jnp.asarray(scal, jnp.float32),
            "wvec": jnp.asarray(wvec, jnp.float32)}


# ----------------------------------------------------------------------------
# Wrapper: single jitted function = input packing + one pallas_call + output slice.
# ----------------------------------------------------------------------------
@jax.jit
def tcn_attention_forward(x, scal, wvec):
    B, C, L = x.shape
    assert B == BATCH and C == NUM_INPUTS and L == SEQ_LEN

    # (B, 1, L) -> (B, 128): sublane = batch, time on lanes 0..L-1, zero padded.
    x_rows = jnp.zeros((B, LANES), jnp.float32).at[:, :L].set(x[:, 0, :].astype(jnp.float32))

    out = pl.pallas_call(
        tcn_attention_kernel,
        out_shape=jax.ShapeDtypeStruct((B, LANES), jnp.float32),
        in_specs=[
            pl.BlockSpec(memory_space=pltpu.MemorySpace.VMEM),   # x rows
            pl.BlockSpec(memory_space=pltpu.MemorySpace.VMEM),   # folded head vector
            pl.BlockSpec(memory_space=pltpu.MemorySpace.SMEM),   # scalar parameter slab
        ],
        out_specs=pl.BlockSpec(memory_space=pltpu.MemorySpace.VMEM),
    )(x_rows, wvec, scal)

    return out[:, :1]    # (B, 1) == `pred` from the PyTorch module


# ----------------------------------------------------------------------------
# Pure-JAX reference (mirrors the PyTorch forward, eval mode, full attention path)
# ----------------------------------------------------------------------------
def reference_forward(x, p):
    L = SEQ_LEN
    PH = jax.lax.Precision.HIGHEST

    def ein(eq, *ops):
        return jnp.einsum(eq, *ops, precision=PH)

    def conv(h, w, b, d):
        hp = jnp.pad(h, ((0, 0), (0, 0), (d, 0)))[:, :, :L]   # h[:, :, t-d], zeros for t<d
        return (ein("oc,bcl->bol", w[:, :, 0], hp)
                + ein("oc,bcl->bol", w[:, :, 1], h)
                + b[None, :, None])

    def block(h, w1, b1, w2, b2, wd, bd, d):
        c1 = jax.nn.relu(conv(h, w1, b1, d))
        c2 = jax.nn.relu(conv(c1, w2, b2, d))
        res = ein("oc,bcl->bol", wd[:, :, 0], h) + bd[None, :, None]
        return jax.nn.relu(c2 + res)

    o = block(x, p["b1_w1"], p["b1_b1"], p["b1_w2"], p["b1_b2"], p["b1_wd"], p["b1_bd"], 1)
    o = block(o, p["b2_w1"], p["b2_b1"], p["b2_w2"], p["b2_b2"], p["b2_wd"], p["b2_bd"], 2)

    B, H, E = x.shape[0], N_HEADS, L // N_HEADS
    q = (ein("bsl,ol->bso", o, p["wq"]) + p["bq"]).reshape(B, 1, H, E)
    k = (ein("bsl,ol->bso", o, p["wk"]) + p["bk"]).reshape(B, 1, H, E)
    v = (ein("bsl,ol->bso", o, p["wv"]) + p["bv"]).reshape(B, 1, H, E)
    scores = ein("blhe,bshe->bhls", q, k) / math.sqrt(E)
    A = jax.nn.softmax(scores, axis=-1)
    vo = ein("bhls,bshe->blhe", A, v).reshape(B, 1, H * E)
    att = (ein("bso,do->bsd", vo, p["wo"]) + p["bo"])[:, 0, :]
    return ein("bd,od->bo", att, p["w_out"]) + p["b_out"][None, :]


# ----------------------------------------------------------------------------
if __name__ == "__main__":
    key = jax.random.PRNGKey(0)
    k_x, k_p = jax.random.split(key)
    x = jax.random.normal(k_x, (BATCH, NUM_INPUTS, SEQ_LEN), dtype=jnp.float32)
    params = init_params(k_p)
    packed = pack_params(params)

    pred = jax.block_until_ready(tcn_attention_forward(x, packed["scal"], packed["wvec"]))
    ref = jax.block_until_ready(reference_forward(x, params))

    assert pred.shape == (BATCH, 1)
    # Kernel is exact f32 VPU arithmetic and the reference runs HIGHEST-precision dots,
    # so the tolerance is much tighter than v2's rtol=1e-2.
    np.testing.assert_allclose(np.asarray(pred), np.asarray(ref), rtol=5e-4, atol=1e-5)
    print("KERNEL_OK")
</pallas_src>

<mosaic_0001>
module attributes {stable_mosaic.version = 11 : i64} {
  func.func @tcn_attention_kernel(%arg0: memref<2x128xf32, #tpu.memory_space<vmem>>, %arg1: memref<1x128xf32, #tpu.memory_space<vmem>>, %arg2: memref<74xf32, #tpu.memory_space<smem>>, %arg3: memref<2x128xf32, #tpu.memory_space<vmem>>) attributes {dimension_semantics = [], scalar_prefetch = 0 : i64, scratch_operands = 0 : i64, tpu.core_type = #tpu.core_type<tc>} {
    %c0 = arith.constant 0 : index
    %c0_0 = arith.constant 0 : index
    %0 = vector.load %arg0[%c0, %c0_0] : memref<2x128xf32, #tpu.memory_space<vmem>>, vector<2x128xf32>
    %c0_1 = arith.constant 0 : index
    %c0_2 = arith.constant 0 : index
    %1 = vector.load %arg1[%c0_1, %c0_2] : memref<1x128xf32, #tpu.memory_space<vmem>>, vector<1x128xf32>
    %2 = tpu.iota {dimensions = array<i32: 1>} : vector<1x128xi32>
    %c1_i32 = arith.constant 1 : i32
    %3 = vector.broadcast %c1_i32 : i32 to vector<1x128xi32>
    %4 = arith.cmpi sge, %2, %3 : vector<1x128xi32>
    %5 = arith.extui %4 : vector<1x128xi1> to vector<1x128xi32>
    %6 = arith.sitofp %5 : vector<1x128xi32> to vector<1x128xf32>
    %c2_i32 = arith.constant 2 : i32
    %7 = vector.broadcast %c2_i32 : i32 to vector<1x128xi32>
    %8 = arith.cmpi sge, %2, %7 : vector<1x128xi32>
    %9 = arith.extui %8 : vector<1x128xi1> to vector<1x128xi32>
    %10 = arith.sitofp %9 : vector<1x128xi32> to vector<1x128xf32>
    %c1_i32_3 = arith.constant 1 : i32
    %11 = tpu.dynamic_rotate %0 by %c1_i32_3 dim 1 : vector<2x128xf32>, i32 -> vector<2x128xf32>
    %12 = vector.broadcast %6 : vector<1x128xf32> to vector<2x128xf32>
    %13 = arith.mulf %11, %12 : vector<2x128xf32>
    %c0_4 = arith.constant 0 : index
    %14 = memref.load %arg2[%c0_4] : memref<74xf32, #tpu.memory_space<smem>>
    %15 = vector.broadcast %14 : f32 to vector<2x128xf32>
    %16 = arith.mulf %15, %13 : vector<2x128xf32>
    %c1 = arith.constant 1 : index
    %17 = memref.load %arg2[%c1] : memref<74xf32, #tpu.memory_space<smem>>
    %18 = vector.broadcast %17 : f32 to vector<2x128xf32>
    %19 = arith.mulf %18, %0 : vector<2x128xf32>
    %20 = arith.addf %16, %19 : vector<2x128xf32>
    %c8 = arith.constant 8 : index
    %21 = memref.load %arg2[%c8] : memref<74xf32, #tpu.memory_space<smem>>
    %22 = vector.broadcast %21 : f32 to vector<2x128xf32>
    %23 = arith.addf %20, %22 : vector<2x128xf32>
    %c2 = arith.constant 2 : index
    %24 = memref.load %arg2[%c2] : memref<74xf32, #tpu.memory_space<smem>>
    %25 = vector.broadcast %24 : f32 to vector<2x128xf32>
    %26 = arith.mulf %25, %13 : vector<2x128xf32>
    %c3 = arith.constant 3 : index
    %27 = memref.load %arg2[%c3] : memref<74xf32, #tpu.memory_space<smem>>
    %28 = vector.broadcast %27 : f32 to vector<2x128xf32>
    %29 = arith.mulf %28, %0 : vector<2x128xf32>
    %30 = arith.addf %26, %29 : vector<2x128xf32>
    %c9 = arith.constant 9 : index
    %31 = memref.load %arg2[%c9] : memref<74xf32, #tpu.memory_space<smem>>
    %32 = vector.broadcast %31 : f32 to vector<2x128xf32>
    %33 = arith.addf %30, %32 : vector<2x128xf32>
    %c4 = arith.constant 4 : index
    %34 = memref.load %arg2[%c4] : memref<74xf32, #tpu.memory_space<smem>>
    %35 = vector.broadcast %34 : f32 to vector<2x128xf32>
    %36 = arith.mulf %35, %13 : vector<2x128xf32>
    %c5 = arith.constant 5 : index
    %37 = memref.load %arg2[%c5] : memref<74xf32, #tpu.memory_space<smem>>
    %38 = vector.broadcast %37 : f32 to vector<2x128xf32>
    %39 = arith.mulf %38, %0 : vector<2x128xf32>
    %40 = arith.addf %36, %39 : vector<2x128xf32>
    %c10 = arith.constant 10 : index
    %41 = memref.load %arg2[%c10] : memref<74xf32, #tpu.memory_space<smem>>
    %42 = vector.broadcast %41 : f32 to vector<2x128xf32>
    %43 = arith.addf %40, %42 : vector<2x128xf32>
    %c6 = arith.constant 6 : index
    %44 = memref.load %arg2[%c6] : memref<74xf32, #tpu.memory_space<smem>>
    %45 = vector.broadcast %44 : f32 to vector<2x128xf32>
    %46 = arith.mulf %45, %13 : vector<2x128xf32>
    %c7 = arith.constant 7 : index
    %47 = memref.load %arg2[%c7] : memref<74xf32, #tpu.memory_space<smem>>
    %48 = vector.broadcast %47 : f32 to vector<2x128xf32>
    %49 = arith.mulf %48, %0 : vector<2x128xf32>
    %50 = arith.addf %46, %49 : vector<2x128xf32>
    %c11 = arith.constant 11 : index
    %51 = memref.load %arg2[%c11] : memref<74xf32, #tpu.memory_space<smem>>
    %52 = vector.broadcast %51 : f32 to vector<2x128xf32>
    %53 = arith.addf %50, %52 : vector<2x128xf32>
    %54 = tpu.concatenate %23, %33, %43, %53 in 0 : vector<2x128xf32>, vector<2x128xf32>, vector<2x128xf32>, vector<2x128xf32> -> vector<8x128xf32>
    %cst = arith.constant 0.000000e+00 : f32
    %55 = vector.broadcast %cst : f32 to vector<8x128xf32>
    %56 = arith.maximumf %54, %55 : vector<8x128xf32>
    %c1_i32_5 = arith.constant 1 : i32
    %57 = tpu.dynamic_rotate %56 by %c1_i32_5 dim 1 : vector<8x128xf32>, i32 -> vector<8x128xf32>
    %58 = vector.broadcast %6 : vector<1x128xf32> to vector<8x128xf32>
    %59 = arith.mulf %57, %58 : vector<8x128xf32>
    %60 = vector.extract_strided_slice %56 {offsets = [0, 0], sizes = [2, 128], strides = [1, 1]} : vector<8x128xf32> to vector<2x128xf32>
    %61 = vector.extract_strided_slice %56 {offsets = [2, 0], sizes = [2, 128], strides = [1, 1]} : vector<8x128xf32> to vector<2x128xf32>
    %62 = vector.extract_strided_slice %56 {offsets = [4, 0], sizes = [2, 128], strides = [1, 1]} : vector<8x128xf32> to vector<2x128xf32>
    %63 = vector.extract_strided_slice %56 {offsets = [6, 0], sizes = [2, 128], strides = [1, 1]} : vector<8x128xf32> to vector<2x128xf32>
    %64 = vector.extract_strided_slice %59 {offsets = [0, 0], sizes = [2, 128], strides = [1, 1]} : vector<8x128xf32> to vector<2x128xf32>
    %65 = vector.extract_strided_slice %59 {offsets = [2, 0], sizes = [2, 128], strides = [1, 1]} : vector<8x128xf32> to vector<2x128xf32>
    %66 = vector.extract_strided_slice %59 {offsets = [4, 0], sizes = [2, 128], strides = [1, 1]} : vector<8x128xf32> to vector<2x128xf32>
    %67 = vector.extract_strided_slice %59 {offsets = [6, 0], sizes = [2, 128], strides = [1, 1]} : vector<8x128xf32> to vector<2x128xf32>
    %c12 = arith.constant 12 : index
    %68 = memref.load %arg2[%c12] : memref<74xf32, #tpu.memory_space<smem>>
    %69 = vector.broadcast %68 : f32 to vector<2x128xf32>
    %70 = arith.mulf %69, %64 : vector<2x128xf32>
    %c13 = arith.constant 13 : index
    %71 = memref.load %arg2[%c13] : memref<74xf32, #tpu.memory_space<smem>>
    %72 = vector.broadcast %71 : f32 to vector<2x128xf32>
    %73 = arith.mulf %72, %60 : vector<2x128xf32>
    %74 = arith.addf %70, %73 : vector<2x128xf32>
    %c14 = arith.constant 14 : index
    %75 = memref.load %arg2[%c14] : memref<74xf32, #tpu.memory_space<smem>>
    %76 = vector.broadcast %75 : f32 to vector<2x128xf32>
    %77 = arith.mulf %76, %65 : vector<2x128xf32>
    %c15 = arith.constant 15 : index
    %78 = memref.load %arg2[%c15] : memref<74xf32, #tpu.memory_space<smem>>
    %79 = vector.broadcast %78 : f32 to vector<2x128xf32>
    %80 = arith.mulf %79, %61 : vector<2x128xf32>
    %81 = arith.addf %77, %80 : vector<2x128xf32>
    %82 = arith.addf %74, %81 : vector<2x128xf32>
    %c16 = arith.constant 16 : index
    %83 = memref.load %arg2[%c16] : memref<74xf32, #tpu.memory_space<smem>>
    %84 = vector.broadcast %83 : f32 to vector<2x128xf32>
    %85 = arith.mulf %84, %66 : vector<2x128xf32>
    %c17 = arith.constant 17 : index
    %86 = memref.load %arg2[%c17] : memref<74xf32, #tpu.memory_space<smem>>
    %87 = vector.broadcast %86 : f32 to vector<2x128xf32>
    %88 = arith.mulf %87, %62 : vector<2x128xf32>
    %89 = arith.addf %85, %88 : vector<2x128xf32>
    %90 = arith.addf %82, %89 : vector<2x128xf32>
    %c18 = arith.constant 18 : index
    %91 = memref.load %arg2[%c18] : memref<74xf32, #tpu.memory_space<smem>>
    %92 = vector.broadcast %91 : f32 to vector<2x128xf32>
    %93 = arith.mulf %92, %67 : vector<2x128xf32>
    %c19 = arith.constant 19 : index
    %94 = memref.load %arg2[%c19] : memref<74xf32, #tpu.memory_space<smem>>
    %95 = vector.broadcast %94 : f32 to vector<2x128xf32>
    %96 = arith.mulf %95, %63 : vector<2x128xf32>
    %97 = arith.addf %93, %96 : vector<2x128xf32>
    %98 = arith.addf %90, %97 : vector<2x128xf32>
    %c44 = arith.constant 44 : index
    %99 = memref.load %arg2[%c44] : memref<74xf32, #tpu.memory_space<smem>>
    %100 = vector.broadcast %99 : f32 to vector<2x128xf32>
    %101 = arith.addf %98, %100 : vector<2x128xf32>
    %c20 = arith.constant 20 : index
    %102 = memref.load %arg2[%c20] : memref<74xf32, #tpu.memory_space<smem>>
    %103 = vector.broadcast %102 : f32 to vector<2x128xf32>
    %104 = arith.mulf %103, %64 : vector<2x128xf32>
    %c21 = arith.constant 21 : index
    %105 = memref.load %arg2[%c21] : memref<74xf32, #tpu.memory_space<smem>>
    %106 = vector.broadcast %105 : f32 to vector<2x128xf32>
    %107 = arith.mulf %106, %60 : vector<2x128xf32>
    %108 = arith.addf %104, %107 : vector<2x128xf32>
    %c22 = arith.constant 22 : index
    %109 = memref.load %arg2[%c22] : memref<74xf32, #tpu.memory_space<smem>>
    %110 = vector.broadcast %109 : f32 to vector<2x128xf32>
    %111 = arith.mulf %110, %65 : vector<2x128xf32>
    %c23 = arith.constant 23 : index
    %112 = memref.load %arg2[%c23] : memref<74xf32, #tpu.memory_space<smem>>
    %113 = vector.broadcast %112 : f32 to vector<2x128xf32>
    %114 = arith.mulf %113, %61 : vector<2x128xf32>
    %115 = arith.addf %111, %114 : vector<2x128xf32>
    %116 = arith.addf %108, %115 : vector<2x128xf32>
    %c24 = arith.constant 24 : index
    %117 = memref.load %arg2[%c24] : memref<74xf32, #tpu.memory_space<smem>>
    %118 = vector.broadcast %117 : f32 to vector<2x128xf32>
    %119 = arith.mulf %118, %66 : vector<2x128xf32>
    %c25 = arith.constant 25 : index
    %120 = memref.load %arg2[%c25] : memref<74xf32, #tpu.memory_space<smem>>
    %121 = vector.broadcast %120 : f32 to vector<2x128xf32>
    %122 = arith.mulf %121, %62 : vector<2x128xf32>
    %123 = arith.addf %119, %122 : vector<2x128xf32>
    %124 = arith.addf %116, %123 : vector<2x128xf32>
    %c26 = arith.constant 26 : index
    %125 = memref.load %arg2[%c26] : memref<74xf32, #tpu.memory_space<smem>>
    %126 = vector.broadcast %125 : f32 to vector<2x128xf32>
    %127 = arith.mulf %126, %67 : vector<2x128xf32>
    %c27 = arith.constant 27 : index
    %128 = memref.load %arg2[%c27] : memref<74xf32, #tpu.memory_space<smem>>
    %129 = vector.broadcast %128 : f32 to vector<2x128xf32>
    %130 = arith.mulf %129, %63 : vector<2x128xf32>
    %131 = arith.addf %127, %130 : vector<2x128xf32>
    %132 = arith.addf %124, %131 : vector<2x128xf32>
    %c45 = arith.constant 45 : index
    %133 = memref.load %arg2[%c45] : memref<74xf32, #tpu.memory_space<smem>>
    %134 = vector.broadcast %133 : f32 to vector<2x128xf32>
    %135 = arith.addf %132, %134 : vector<2x128xf32>
    %c28 = arith.constant 28 : index
    %136 = memref.load %arg2[%c28] : memref<74xf32, #tpu.memory_space<smem>>
    %137 = vector.broadcast %136 : f32 to vector<2x128xf32>
    %138 = arith.mulf %137, %64 : vector<2x128xf32>
    %c29 = arith.constant 29 : index
    %139 = memref.load %arg2[%c29] : memref<74xf32, #tpu.memory_space<smem>>
    %140 = vector.broadcast %139 : f32 to vector<2x128xf32>
    %141 = arith.mulf %140, %60 : vector<2x128xf32>
    %142 = arith.addf %138, %141 : vector<2x128xf32>
    %c30 = arith.constant 30 : index
    %143 = memref.load %arg2[%c30] : memref<74xf32, #tpu.memory_space<smem>>
    %144 = vector.broadcast %143 : f32 to vector<2x128xf32>
    %145 = arith.mulf %144, %65 : vector<2x128xf32>
    %c31 = arith.constant 31 : index
    %146 = memref.load %arg2[%c31] : memref<74xf32, #tpu.memory_space<smem>>
    %147 = vector.broadcast %146 : f32 to vector<2x128xf32>
    %148 = arith.mulf %147, %61 : vector<2x128xf32>
    %149 = arith.addf %145, %148 : vector<2x128xf32>
    %150 = arith.addf %142, %149 : vector<2x128xf32>
    %c32 = arith.constant 32 : index
    %151 = memref.load %arg2[%c32] : memref<74xf32, #tpu.memory_space<smem>>
    %152 = vector.broadcast %151 : f32 to vector<2x128xf32>
    %153 = arith.mulf %152, %66 : vector<2x128xf32>
    %c33 = arith.constant 33 : index
    %154 = memref.load %arg2[%c33] : memref<74xf32, #tpu.memory_space<smem>>
    %155 = vector.broadcast %154 : f32 to vector<2x128xf32>
    %156 = arith.mulf %155, %62 : vector<2x128xf32>
    %157 = arith.addf %153, %156 : vector<2x128xf32>
    %158 = arith.addf %150, %157 : vector<2x128xf32>
    %c34 = arith.constant 34 : index
    %159 = memref.load %arg2[%c34] : memref<74xf32, #tpu.memory_space<smem>>
    %160 = vector.broadcast %159 : f32 to vector<2x128xf32>
    %161 = arith.mulf %160, %67 : vector<2x128xf32>
    %c35 = arith.constant 35 : index
    %162 = memref.load %arg2[%c35] : memref<74xf32, #tpu.memory_space<smem>>
    %163 = vector.broadcast %162 : f32 to vector<2x128xf32>
    %164 = arith.mulf %163, %63 : vector<2x128xf32>
    %165 = arith.addf %161, %164 : vector<2x128xf32>
    %166 = arith.addf %158, %165 : vector<2x128xf32>
    %c46 = arith.constant 46 : index
    %167 = memref.load %arg2[%c46] : memref<74xf32, #tpu.memory_space<smem>>
    %168 = vector.broadcast %167 : f32 to vector<2x128xf32>
    %169 = arith.addf %166, %168 : vector<2x128xf32>
    %c36 = arith.constant 36 : index
    %170 = memref.load %arg2[%c36] : memref<74xf32, #tpu.memory_space<smem>>
    %171 = vector.broadcast %170 : f32 to vector<2x128xf32>
    %172 = arith.mulf %171, %64 : vector<2x128xf32>
    %c37 = arith.constant 37 : index
    %173 = memref.load %arg2[%c37] : memref<74xf32, #tpu.memory_space<smem>>
    %174 = vector.broadcast %173 : f32 to vector<2x128xf32>
    %175 = arith.mulf %174, %60 : vector<2x128xf32>
    %176 = arith.addf %172, %175 : vector<2x128xf32>
    %c38 = arith.constant 38 : index
    %177 = memref.load %arg2[%c38] : memref<74xf32, #tpu.memory_space<smem>>
    %178 = vector.broadcast %177 : f32 to vector<2x128xf32>
    %179 = arith.mulf %178, %65 : vector<2x128xf32>
    %c39 = arith.constant 39 : index
    %180 = memref.load %arg2[%c39] : memref<74xf32, #tpu.memory_space<smem>>
    %181 = vector.broadcast %180 : f32 to vector<2x128xf32>
    %182 = arith.mulf %181, %61 : vector<2x128xf32>
    %183 = arith.addf %179, %182 : vector<2x128xf32>
    %184 = arith.addf %176, %183 : vector<2x128xf32>
    %c40 = arith.constant 40 : index
    %185 = memref.load %arg2[%c40] : memref<74xf32, #tpu.memory_space<smem>>
    %186 = vector.broadcast %185 : f32 to vector<2x128xf32>
    %187 = arith.mulf %186, %66 : vector<2x128xf32>
    %c41 = arith.constant 41 : index
    %188 = memref.load %arg2[%c41] : memref<74xf32, #tpu.memory_space<smem>>
    %189 = vector.broadcast %188 : f32 to vector<2x128xf32>
    %190 = arith.mulf %189, %62 : vector<2x128xf32>
    %191 = arith.addf %187, %190 : vector<2x128xf32>
    %192 = arith.addf %184, %191 : vector<2x128xf32>
    %c42 = arith.constant 42 : index
    %193 = memref.load %arg2[%c42] : memref<74xf32, #tpu.memory_space<smem>>
    %194 = vector.broadcast %193 : f32 to vector<2x128xf32>
    %195 = arith.mulf %194, %67 : vector<2x128xf32>
    %c43 = arith.constant 43 : index
    %196 = memref.load %arg2[%c43] : memref<74xf32, #tpu.memory_space<smem>>
    %197 = vector.broadcast %196 : f32 to vector<2x128xf32>
    %198 = arith.mulf %197, %63 : vector<2x128xf32>
    %199 = arith.addf %195, %198 : vector<2x128xf32>
    %200 = arith.addf %192, %199 : vector<2x128xf32>
    %c47 = arith.constant 47 : index
    %201 = memref.load %arg2[%c47] : memref<74xf32, #tpu.memory_space<smem>>
    %202 = vector.broadcast %201 : f32 to vector<2x128xf32>
    %203 = arith.addf %200, %202 : vector<2x128xf32>
    %204 = tpu.concatenate %101, %135, %169, %203 in 0 : vector<2x128xf32>, vector<2x128xf32>, vector<2x128xf32>, vector<2x128xf32> -> vector<8x128xf32>
    %cst_6 = arith.constant 0.000000e+00 : f32
    %205 = vector.broadcast %cst_6 : f32 to vector<8x128xf32>
    %206 = arith.maximumf %204, %205 : vector<8x128xf32>
    %c48 = arith.constant 48 : index
    %207 = memref.load %arg2[%c48] : memref<74xf32, #tpu.memory_space<smem>>
    %208 = vector.broadcast %207 : f32 to vector<2x128xf32>
    %209 = arith.mulf %208, %0 : vector<2x128xf32>
    %c52 = arith.constant 52 : index
    %210 = memref.load %arg2[%c52] : memref<74xf32, #tpu.memory_space<smem>>
    %211 = vector.broadcast %210 : f32 to vector<2x128xf32>
    %212 = arith.addf %209, %211 : vector<2x128xf32>
    %c49 = arith.constant 49 : index
    %213 = memref.load %arg2[%c49] : memref<74xf32, #tpu.memory_space<smem>>
    %214 = vector.broadcast %213 : f32 to vector<2x128xf32>
    %215 = arith.mulf %214, %0 : vector<2x128xf32>
    %c53 = arith.constant 53 : index
    %216 = memref.load %arg2[%c53] : memref<74xf32, #tpu.memory_space<smem>>
    %217 = vector.broadcast %216 : f32 to vector<2x128xf32>
    %218 = arith.addf %215, %217 : vector<2x128xf32>
    %c50 = arith.constant 50 : index
    %219 = memref.load %arg2[%c50] : memref<74xf32, #tpu.memory_space<smem>>
    %220 = vector.broadcast %219 : f32 to vector<2x128xf32>
    %221 = arith.mulf %220, %0 : vector<2x128xf32>
    %c54 = arith.constant 54 : index
    %222 = memref.load %arg2[%c54] : memref<74xf32, #tpu.memory_space<smem>>
    %223 = vector.broadcast %222 : f32 to vector<2x128xf32>
    %224 = arith.addf %221, %223 : vector<2x128xf32>
    %c51 = arith.constant 51 : index
    %225 = memref.load %arg2[%c51] : memref<74xf32, #tpu.memory_space<smem>>
    %226 = vector.broadcast %225 : f32 to vector<2x128xf32>
    %227 = arith.mulf %226, %0 : vector<2x128xf32>
    %c55 = arith.constant 55 : index
    %228 = memref.load %arg2[%c55] : memref<74xf32, #tpu.memory_space<smem>>
    %229 = vector.broadcast %228 : f32 to vector<2x128xf32>
    %230 = arith.addf %227, %229 : vector<2x128xf32>
    %231 = tpu.concatenate %212, %218, %224, %230 in 0 : vector<2x128xf32>, vector<2x128xf32>, vector<2x128xf32>, vector<2x128xf32> -> vector<8x128xf32>
    %232 = arith.addf %206, %231 : vector<8x128xf32>
    %cst_7 = arith.constant 0.000000e+00 : f32
    %233 = vector.broadcast %cst_7 : f32 to vector<8x128xf32>
    %234 = arith.maximumf %232, %233 : vector<8x128xf32>
    %c2_i32_8 = arith.constant 2 : i32
    %235 = tpu.dynamic_rotate %234 by %c2_i32_8 dim 1 : vector<8x128xf32>, i32 -> vector<8x128xf32>
    %236 = vector.broadcast %10 : vector<1x128xf32> to vector<8x128xf32>
    %237 = arith.mulf %235, %236 : vector<8x128xf32>
    %238 = vector.extract_strided_slice %234 {offsets = [0, 0], sizes = [2, 128], strides = [1, 1]} : vector<8x128xf32> to vector<2x128xf32>
    %239 = vector.extract_strided_slice %234 {offsets = [2, 0], sizes = [2, 128], strides = [1, 1]} : vector<8x128xf32> to vector<2x128xf32>
    %240 = vector.extract_strided_slice %234 {offsets = [4, 0], sizes = [2, 128], strides = [1, 1]} : vector<8x128xf32> to vector<2x128xf32>
    %241 = vector.extract_strided_slice %234 {offsets = [6, 0], sizes = [2, 128], strides = [1, 1]} : vector<8x128xf32> to vector<2x128xf32>
    %242 = vector.extract_strided_slice %237 {offsets = [0, 0], sizes = [2, 128], strides = [1, 1]} : vector<8x128xf32> to vector<2x128xf32>
    %243 = vector.extract_strided_slice %237 {offsets = [2, 0], sizes = [2, 128], strides = [1, 1]} : vector<8x128xf32> to vector<2x128xf32>
    %244 = vector.extract_strided_slice %237 {offsets = [4, 0], sizes = [2, 128], strides = [1, 1]} : vector<8x128xf32> to vector<2x128xf32>
    %245 = vector.extract_strided_slice %237 {offsets = [6, 0], sizes = [2, 128], strides = [1, 1]} : vector<8x128xf32> to vector<2x128xf32>
    %c56 = arith.constant 56 : index
    %246 = memref.load %arg2[%c56] : memref<74xf32, #tpu.memory_space<smem>>
    %247 = vector.broadcast %246 : f32 to vector<2x128xf32>
    %248 = arith.mulf %247, %242 : vector<2x128xf32>
    %c57 = arith.constant 57 : index
    %249 = memref.load %arg2[%c57] : memref<74xf32, #tpu.memory_space<smem>>
    %250 = vector.broadcast %249 : f32 to vector<2x128xf32>
    %251 = arith.mulf %250, %238 : vector<2x128xf32>
    %252 = arith.addf %248, %251 : vector<2x128xf32>
    %c58 = arith.constant 58 : index
    %253 = memref.load %arg2[%c58] : memref<74xf32, #tpu.memory_space<smem>>
    %254 = vector.broadcast %253 : f32 to vector<2x128xf32>
    %255 = arith.mulf %254, %243 : vector<2x128xf32>
    %c59 = arith.constant 59 : index
    %256 = memref.load %arg2[%c59] : memref<74xf32, #tpu.memory_space<smem>>
    %257 = vector.broadcast %256 : f32 to vector<2x128xf32>
    %258 = arith.mulf %257, %239 : vector<2x128xf32>
    %259 = arith.addf %255, %258 : vector<2x128xf32>
    %260 = arith.addf %252, %259 : vector<2x128xf32>
    %c60 = arith.constant 60 : index
    %261 = memref.load %arg2[%c60] : memref<74xf32, #tpu.memory_space<smem>>
    %262 = vector.broadcast %261 : f32 to vector<2x128xf32>
    %263 = arith.mulf %262, %244 : vector<2x128xf32>
    %c61 = arith.constant 61 : index
    %264 = memref.load %arg2[%c61] : memref<74xf32, #tpu.memory_space<smem>>
    %265 = vector.broadcast %264 : f32 to vector<2x128xf32>
    %266 = arith.mulf %265, %240 : vector<2x128xf32>
    %267 = arith.addf %263, %266 : vector<2x128xf32>
    %268 = arith.addf %260, %267 : vector<2x128xf32>
    %c62 = arith.constant 62 : index
    %269 = memref.load %arg2[%c62] : memref<74xf32, #tpu.memory_space<smem>>
    %270 = vector.broadcast %269 : f32 to vector<2x128xf32>
    %271 = arith.mulf %270, %245 : vector<2x128xf32>
    %c63 = arith.constant 63 : index
    %272 = memref.load %arg2[%c63] : memref<74xf32, #tpu.memory_space<smem>>
    %273 = vector.broadcast %272 : f32 to vector<2x128xf32>
    %274 = arith.mulf %273, %241 : vector<2x128xf32>
    %275 = arith.addf %271, %274 : vector<2x128xf32>
    %276 = arith.addf %268, %275 : vector<2x128xf32>
    %c64 = arith.constant 64 : index
    %277 = memref.load %arg2[%c64] : memref<74xf32, #tpu.memory_space<smem>>
    %278 = vector.broadcast %277 : f32 to vector<2x128xf32>
    %279 = arith.addf %276, %278 : vector<2x128xf32>
    %cst_9 = arith.constant 0.000000e+00 : f32
    %280 = vector.broadcast %cst_9 : f32 to vector<2x128xf32>
    %281 = arith.maximumf %279, %280 : vector<2x128xf32>
    %c2_i32_10 = arith.constant 2 : i32
    %282 = tpu.dynamic_rotate %281 by %c2_i32_10 dim 1 : vector<2x128xf32>, i32 -> vector<2x128xf32>
    %283 = vector.broadcast %10 : vector<1x128xf32> to vector<2x128xf32>
    %284 = arith.mulf %282, %283 : vector<2x128xf32>
    %c65 = arith.constant 65 : index
    %285 = memref.load %arg2[%c65] : memref<74xf32, #tpu.memory_space<smem>>
    %286 = vector.broadcast %285 : f32 to vector<2x128xf32>
    %287 = arith.mulf %286, %284 : vector<2x128xf32>
    %c66 = arith.constant 66 : index
    %288 = memref.load %arg2[%c66] : memref<74xf32, #tpu.memory_space<smem>>
    %289 = vector.broadcast %288 : f32 to vector<2x128xf32>
    %290 = arith.mulf %289, %281 : vector<2x128xf32>
    %291 = arith.addf %287, %290 : vector<2x128xf32>
    %c67 = arith.constant 67 : index
    %292 = memref.load %arg2[%c67] : memref<74xf32, #tpu.memory_space<smem>>
    %293 = vector.broadcast %292 : f32 to vector<2x128xf32>
    %294 = arith.addf %291, %293 : vector<2x128xf32>
    %cst_11 = arith.constant 0.000000e+00 : f32
    %295 = vector.broadcast %cst_11 : f32 to vector<2x128xf32>
    %296 = arith.maximumf %294, %295 : vector<2x128xf32>
    %297 = vector.extract_strided_slice %234 {offsets = [0, 0], sizes = [2, 128], strides = [1, 1]} : vector<8x128xf32> to vector<2x128xf32>
    %298 = vector.extract_strided_slice %234 {offsets = [2, 0], sizes = [2, 128], strides = [1, 1]} : vector<8x128xf32> to vector<2x128xf32>
    %299 = vector.extract_strided_slice %234 {offsets = [4, 0], sizes = [2, 128], strides = [1, 1]} : vector<8x128xf32> to vector<2x128xf32>
    %300 = vector.extract_strided_slice %234 {offsets = [6, 0], sizes = [2, 128], strides = [1, 1]} : vector<8x128xf32> to vector<2x128xf32>
    %c68 = arith.constant 68 : index
    %301 = memref.load %arg2[%c68] : memref<74xf32, #tpu.memory_space<smem>>
    %302 = vector.broadcast %301 : f32 to vector<2x128xf32>
    %303 = arith.mulf %302, %297 : vector<2x128xf32>
    %c69 = arith.constant 69 : index
    %304 = memref.load %arg2[%c69] : memref<74xf32, #tpu.memory_space<smem>>
    %305 = vector.broadcast %304 : f32 to vector<2x128xf32>
    %306 = arith.mulf %305, %298 : vector<2x128xf32>
    %307 = arith.addf %303, %306 : vector<2x128xf32>
    %c70 = arith.constant 70 : index
    %308 = memref.load %arg2[%c70] : memref<74xf32, #tpu.memory_space<smem>>
    %309 = vector.broadcast %308 : f32 to vector<2x128xf32>
    %310 = arith.mulf %309, %299 : vector<2x128xf32>
    %311 = arith.addf %307, %310 : vector<2x128xf32>
    %c71 = arith.constant 71 : index
    %312 = memref.load %arg2[%c71] : memref<74xf32, #tpu.memory_space<smem>>
    %313 = vector.broadcast %312 : f32 to vector<2x128xf32>
    %314 = arith.mulf %313, %300 : vector<2x128xf32>
    %315 = arith.addf %311, %314 : vector<2x128xf32>
    %c72 = arith.constant 72 : index
    %316 = memref.load %arg2[%c72] : memref<74xf32, #tpu.memory_space<smem>>
    %317 = vector.broadcast %316 : f32 to vector<2x128xf32>
    %318 = arith.addf %315, %317 : vector<2x128xf32>
    %319 = arith.addf %296, %318 : vector<2x128xf32>
    %cst_12 = arith.constant 0.000000e+00 : f32
    %320 = vector.broadcast %cst_12 : f32 to vector<2x128xf32>
    %321 = arith.maximumf %319, %320 : vector<2x128xf32>
    %322 = vector.broadcast %1 : vector<1x128xf32> to vector<2x128xf32>
    %323 = arith.mulf %321, %322 : vector<2x128xf32>
    %cst_13 = arith.constant dense<0.000000e+00> : vector<2xf32>
    %324 = vector.multi_reduction <add>, %323, %cst_13 [1] : vector<2x128xf32> to vector<2xf32>
    %325 = vector.shape_cast %324 : vector<2xf32> to vector<2x1xf32>
    %c73 = arith.constant 73 : index
    %326 = memref.load %arg2[%c73] : memref<74xf32, #tpu.memory_space<smem>>
    %327 = vector.broadcast %326 : f32 to vector<2x1xf32>
    %328 = arith.addf %325, %327 : vector<2x1xf32>
    %329 = vector.shape_cast %328 : vector<2x1xf32> to vector<2x1xf32>
    %330 = vector.broadcast %329 : vector<2x1xf32> to vector<2x128xf32>
    %c0_14 = arith.constant 0 : index
    %c0_15 = arith.constant 0 : index
    %331 = vector.load %arg3[%c0_14, %c0_15] : memref<2x128xf32, #tpu.memory_space<vmem>>, vector<2x128xf32>
    tpu.vector_store %arg3[%c0_14, %c0_15], %330 {strides = array<i32>} : memref<2x128xf32, #tpu.memory_space<vmem>>, vector<2x128xf32>,
    return
  }
}

</mosaic_0001>

<llo_original>
// kernel: tcn_attention_forward.1
$region0: #{tcn_attention_forward.1}
  #allocation0 [shape = 'u32[]', space=smem, size = 0x4, offset = 0x4, fixed_abs, tag = 'smem constant byte address 0x4 - core index']
  #allocation1 [shape = 'u32[144,128]{1,0:T(1,128)}', space=vmem, size = 0x12000, scoped, tag = 'internal scratch']
  %s0 = inlined_call_operand.vmem [shape: f32[2,128], index: 0, kind: input, shape index: {}]
  %s1 = inlined_call_operand.vmem [shape: f32[1,128], index: 1, kind: input, shape index: {}]
  %s2 = inlined_call_operand.vmem [shape: f32[74], index: 2, kind: input, shape index: {}]
  %s3 = inlined_call_operand.vmem [shape: f32[2,128], index: 3, kind: output, shape index: {}]
  %s4 = sld [smem:[#allocation0]]
  $region26: #{tcn_attention_forward.1} parent=0
    _
  %s6 = ssub.s32 1, %s4
  %s7 = scalar_select 0, %s6, %s4
  $region1: #{tcn_attention_forward.1} parent=0
    #allocation2 [shape = 'u8[512]{0}', space=smem, size = 0x200, scoped, tag = 'input window, operand 2, single buffered']
    #allocation3 [shape = 's32[1]{0}', space=sflag, size = 0x4, scoped, tag = 'scoped memory for tcn_attention_forward.1']
    %8 = vsyncpa [#allocation3], 0
    // Predicated region
    $region2: #{tcn_attention_forward.1} parent=1 // pred_check
      _
    $region3: #{tcn_attention_forward.1} parent=1 // pred_check_branch
      %10 = sbr.rel (0) target = $region5
    $region4: #{tcn_attention_forward.1} parent=1 // pred_region
      _
    $region5: #{tcn_attention_forward.1} parent=1 // pred_fallthru
      _
    // Predicated region
    $region6: #{tcn_attention_forward.1} parent=1 // pred_check
      _
    $region7: #{tcn_attention_forward.1} parent=1 // pred_check_branch
      %12 = sbr.rel (0) target = $region9
    $region8: #{tcn_attention_forward.1} parent=1 // pred_region
      _
    $region9: #{tcn_attention_forward.1} parent=1 // pred_fallthru
      _
    // Predicated region
    $region10: #{tcn_attention_forward.1} parent=1 // pred_check
      _
    $region11: #{tcn_attention_forward.1} parent=1 // pred_check_branch
      %14 = sbr.rel (0) target = $region13
    $region12: #{tcn_attention_forward.1} parent=1 // pred_region
      %s16 = ssub.s32 16, 16
      %17 = vsyncadd [#allocation3], %s16
      %s19 = sshll.u32 %s2, 4
      %s20 = int_to_ptr.vmem [resolvable:$true] %s19
      %22 = dma.vmem_to_smem %s20, 16, [#allocation2], [#allocation3]
    $region13: #{tcn_attention_forward.1} parent=1 // pred_fallthru
      _
    // Predicated region
    $region14: #{tcn_attention_forward.1} parent=1 // pred_check
      _
    $region15: #{tcn_attention_forward.1} parent=1 // pred_check_branch
      %24 = sbr.rel (0) target = $region17
    $region16: #{tcn_attention_forward.1} parent=1 // pred_region
      %25 = dma.done [#allocation3], 16
    $region17: #{tcn_attention_forward.1} parent=1 // pred_fallthru
      _
    %26 = sfence
    %v27 = vld [vmem:[%s0] sm:$0x3]
    %v28 = vld [vmem:[%s1] sm:$0x1]
    %v29 = vlaneseq
    %v30 = vand.u32 %v29, 127
    %vm31 = vcmp.ge.s32.totalorder %v30, 1
    %v32 = vsel %vm31, 1, 0
    %v33 = vcvt.s32.f32 %v32
    %vm34 = vcmp.ge.s32.totalorder %v30, 2
    %v35 = vsel %vm34, 1, 0
    %v36 = vcvt.s32.f32 %v35
    %37 = vrot.lane.b32.xlu0 %v27, 1
    %v38 = vpop.permute.xlu0 %37
    %v39 = vmul.f32 %v38, %v33
    %s40 = sld [smem:[#allocation2]]
    %v41 = vstv %s40
    %v42 = vmul.f32 %v41, %v39
    %s43 = sld [smem:[#allocation2 + $0x1]]
    %v44 = vstv %s43
    %v45 = vmul.f32 %v44, %v27
    %v46 = vadd.f32 %v42, %v45
    %s47 = sld [smem:[#allocation2 + $0x8]]
    %v48 = vstv %s47
    %v49 = vadd.f32 %v46, %v48
    %s50 = sld [smem:[#allocation2 + $0x2]]
    %v51 = vstv %s50
    %v52 = vmul.f32 %v51, %v39
    %s53 = sld [smem:[#allocation2 + $0x3]]
    %v54 = vstv %s53
    %v55 = vmul.f32 %v54, %v27
    %v56 = vadd.f32 %v52, %v55
    %s57 = sld [smem:[#allocation2 + $0x9]]
    %v58 = vstv %s57
    %v59 = vadd.f32 %v56, %v58
    %s60 = sld [smem:[#allocation2 + $0x4]]
    %v61 = vstv %s60
    %v62 = vmul.f32 %v61, %v39
    %s63 = sld [smem:[#allocation2 + $0x5]]
    %v64 = vstv %s63
    %v65 = vmul.f32 %v64, %v27
    %v66 = vadd.f32 %v62, %v65
    %s67 = sld [smem:[#allocation2 + $0xa]]
    %v68 = vstv %s67
    %v69 = vadd.f32 %v66, %v68
    %s70 = sld [smem:[#allocation2 + $0x6]]
    %v71 = vstv %s70
    %v72 = vmul.f32 %v71, %v39
    %s73 = sld [smem:[#allocation2 + $0x7]]
    %v74 = vstv %s73
    %v75 = vmul.f32 %v74, %v27
    %v76 = vadd.f32 %v72, %v75
    %s77 = sld [smem:[#allocation2 + $0xb]]
    %v78 = vstv %s77
    %v79 = vadd.f32 %v76, %v78
    %v81 = vrot.slane %v59, 6
    %v84 = vrot.slane %v69, 4
    %v87 = vrot.slane %v79, 2
    %vm89 = vcmask 1041408
    %v90 = vsel %vm89, %v49, %v81
    %vm91 = vcmask 1043456
    %v92 = vsel %vm91, %v90, %v84
    %vm93 = vcmask 1045504
    %v94 = vsel %vm93, %v92, %v87
    %v95 = vmax.f32 %v94, 0.0
    %96 = vrot.lane.b32.xlu0 %v95, 1
    %v97 = vpop.permute.xlu0 %96
    %v98 = vmul.f32 %v97, %v33
    %s99 = sld [smem:[#allocation2 + $0xc]]
    %v100 = vstv %s99
    %v101 = vmul.f32 %v100, %v98
    %s102 = sld [smem:[#allocation2 + $0xd]]
    %v103 = vstv %s102
    %v104 = vmul.f32 %v103, %v95
    %v105 = vadd.f32 %v101, %v104
    %s106 = sld [smem:[#allocation2 + $0xe]]
    %v107 = vstv %s106
    %v108 = vmul.f32 %v107, %v98
    %s109 = sld [smem:[#allocation2 + $0xf]]
    %v110 = vstv %s109
    %v111 = vmul.f32 %v110, %v95
    %v112 = vadd.f32 %v108, %v111
    %v114 = vrot.slane %v112, 2
    %v116 = vadd.f32 %v105, %v114
    %s117 = sld [smem:[#allocation2 + $0x10]]
    %v118 = vstv %s117
    %v119 = vmul.f32 %v118, %v98
    %s120 = sld [smem:[#allocation2 + $0x11]]
    %v121 = vstv %s120
    %v122 = vmul.f32 %v121, %v95
    %v123 = vadd.f32 %v119, %v122
    %v125 = vrot.slane %v123, 4
    %v127 = vadd.f32 %v116, %v125
    %s128 = sld [smem:[#allocation2 + $0x12]]
    %v129 = vstv %s128
    %v130 = vmul.f32 %v129, %v98
    %s131 = sld [smem:[#allocation2 + $0x13]]
    %v132 = vstv %s131
    %v133 = vmul.f32 %v132, %v95
    %v134 = vadd.f32 %v130, %v133
    %v136 = vrot.slane %v134, 6
    %v138 = vadd.f32 %v127, %v136
    %s139 = sld [smem:[#allocation2 + $0x2c]]
    %v140 = vstv %s139
    %v141 = vadd.f32 %v138, %v140
    %s142 = sld [smem:[#allocation2 + $0x14]]
    %v143 = vstv %s142
    %v144 = vmul.f32 %v143, %v98
    %s145 = sld [smem:[#allocation2 + $0x15]]
    %v146 = vstv %s145
    %v147 = vmul.f32 %v146, %v95
    %v148 = vadd.f32 %v144, %v147
    %s149 = sld [smem:[#allocation2 + $0x16]]
    %v150 = vstv %s149
    %v151 = vmul.f32 %v150, %v98
    %s152 = sld [smem:[#allocation2 + $0x17]]
    %v153 = vstv %s152
    %v154 = vmul.f32 %v153, %v95
    %v155 = vadd.f32 %v151, %v154
    %v157 = vrot.slane %v155, 2
    %v159 = vadd.f32 %v148, %v157
    %s160 = sld [smem:[#allocation2 + $0x18]]
    %v161 = vstv %s160
    %v162 = vmul.f32 %v161, %v98
    %s163 = sld [smem:[#allocation2 + $0x19]]
    %v164 = vstv %s163
    %v165 = vmul.f32 %v164, %v95
    %v166 = vadd.f32 %v162, %v165
    %v168 = vrot.slane %v166, 4
    %v170 = vadd.f32 %v159, %v168
    %s171 = sld [smem:[#allocation2 + $0x1a]]
    %v172 = vstv %s171
    %v173 = vmul.f32 %v172, %v98
    %s174 = sld [smem:[#allocation2 + $0x1b]]
    %v175 = vstv %s174
    %v176 = vmul.f32 %v175, %v95
    %v177 = vadd.f32 %v173, %v176
    %v179 = vrot.slane %v177, 6
    %v181 = vadd.f32 %v170, %v179
    %s182 = sld [smem:[#allocation2 + $0x2d]]
    %v183 = vstv %s182
    %v184 = vadd.f32 %v181, %v183
    %s185 = sld [smem:[#allocation2 + $0x1c]]
    %v186 = vstv %s185
    %v187 = vmul.f32 %v186, %v98
    %s188 = sld [smem:[#allocation2 + $0x1d]]
    %v189 = vstv %s188
    %v190 = vmul.f32 %v189, %v95
    %v191 = vadd.f32 %v187, %v190
    %s192 = sld [smem:[#allocation2 + $0x1e]]
    %v193 = vstv %s192
    %v194 = vmul.f32 %v193, %v98
    %s195 = sld [smem:[#allocation2 + $0x1f]]
    %v196 = vstv %s195
    %v197 = vmul.f32 %v196, %v95
    %v198 = vadd.f32 %v194, %v197
    %v200 = vrot.slane %v198, 2
    %v202 = vadd.f32 %v191, %v200
    %s203 = sld [smem:[#allocation2 + $0x20]]
    %v204 = vstv %s203
    %v205 = vmul.f32 %v204, %v98
    %s206 = sld [smem:[#allocation2 + $0x21]]
    %v207 = vstv %s206
    %v208 = vmul.f32 %v207, %v95
    %v209 = vadd.f32 %v205, %v208
    %v211 = vrot.slane %v209, 4
    %v213 = vadd.f32 %v202, %v211
    %s214 = sld [smem:[#allocation2 + $0x22]]
    %v215 = vstv %s214
    %v216 = vmul.f32 %v215, %v98
    %s217 = sld [smem:[#allocation2 + $0x23]]
    %v218 = vstv %s217
    %v219 = vmul.f32 %v218, %v95
    %v220 = vadd.f32 %v216, %v219
    %v222 = vrot.slane %v220, 6
    %v224 = vadd.f32 %v213, %v222
    %s225 = sld [smem:[#allocation2 + $0x2e]]
    %v226 = vstv %s225
    %v227 = vadd.f32 %v224, %v226
    %s228 = sld [smem:[#allocation2 + $0x24]]
    %v229 = vstv %s228
    %v230 = vmul.f32 %v229, %v98
    %s231 = sld [smem:[#allocation2 + $0x25]]
    %v232 = vstv %s231
    %v233 = vmul.f32 %v232, %v95
    %v234 = vadd.f32 %v230, %v233
    %s235 = sld [smem:[#allocation2 + $0x26]]
    %v236 = vstv %s235
    %v237 = vmul.f32 %v236, %v98
    %s238 = sld [smem:[#allocation2 + $0x27]]
    %v239 = vstv %s238
    %v240 = vmul.f32 %v239, %v95
    %v241 = vadd.f32 %v237, %v240
    %v243 = vrot.slane %v241, 2
    %v245 = vadd.f32 %v234, %v243
    %s246 = sld [smem:[#allocation2 + $0x28]]
    %v247 = vstv %s246
    %v248 = vmul.f32 %v247, %v98
    %s249 = sld [smem:[#allocation2 + $0x29]]
    %v250 = vstv %s249
    %v251 = vmul.f32 %v250, %v95
    %v252 = vadd.f32 %v248, %v251
    %v254 = vrot.slane %v252, 4
    %v256 = vadd.f32 %v245, %v254
    %s257 = sld [smem:[#allocation2 + $0x2a]]
    %v258 = vstv %s257
    %v259 = vmul.f32 %v258, %v98
    %s260 = sld [smem:[#allocation2 + $0x2b]]
    %v261 = vstv %s260
    %v262 = vmul.f32 %v261, %v95
    %v263 = vadd.f32 %v259, %v262
    %v265 = vrot.slane %v263, 6
    %v267 = vadd.f32 %v256, %v265
    %s268 = sld [smem:[#allocation2 + $0x2f]]
    %v269 = vstv %s268
    %v270 = vadd.f32 %v267, %v269
    %v272 = vrot.slane %v184, 6
    %v275 = vrot.slane %v227, 4
    %v278 = vrot.slane %v270, 2
    %v280 = vsel %vm89, %v141, %v272
    %v281 = vsel %vm91, %v280, %v275
    %v282 = vsel %vm93, %v281, %v278
    %v283 = vmax.f32 %v282, 0.0
    %s284 = sld [smem:[#allocation2 + $0x30]]
    %v285 = vstv %s284
    %v286 = vmul.f32 %v285, %v27
    %s287 = sld [smem:[#allocation2 + $0x34]]
    %v288 = vstv %s287
    %v289 = vadd.f32 %v286, %v288
    %s290 = sld [smem:[#allocation2 + $0x31]]
    %v291 = vstv %s290
    %v292 = vmul.f32 %v291, %v27
    %s293 = sld [smem:[#allocation2 + $0x35]]
    %v294 = vstv %s293
    %v295 = vadd.f32 %v292, %v294
    %s296 = sld [smem:[#allocation2 + $0x32]]
    %v297 = vstv %s296
    %v298 = vmul.f32 %v297, %v27
    %s299 = sld [smem:[#allocation2 + $0x36]]
    %v300 = vstv %s299
    %v301 = vadd.f32 %v298, %v300
    %s302 = sld [smem:[#allocation2 + $0x33]]
    %v303 = vstv %s302
    %v304 = vmul.f32 %v303, %v27
    %s305 = sld [smem:[#allocation2 + $0x37]]
    %v306 = vstv %s305
    %v307 = vadd.f32 %v304, %v306
    %v309 = vrot.slane %v295, 6
    %v312 = vrot.slane %v301, 4
    %v315 = vrot.slane %v307, 2
    %v317 = vsel %vm89, %v289, %v309
    %v318 = vsel %vm91, %v317, %v312
    %v319 = vsel %vm93, %v318, %v315
    %v320 = vadd.f32 %v283, %v319
    %v321 = vmax.f32 %v320, 0.0
    %322 = vrot.lane.b32.xlu0 %v321, 2
    %v323 = vpop.permute.xlu0 %322
    %v324 = vmul.f32 %v323, %v36
    %s325 = sld [smem:[#allocation2 + $0x38]]
    %v326 = vstv %s325
    %v327 = vmul.f32 %v326, %v324
    %s328 = sld [smem:[#allocation2 + $0x39]]
    %v329 = vstv %s328
    %v330 = vmul.f32 %v329, %v321
    %v331 = vadd.f32 %v327, %v330
    %s332 = sld [smem:[#allocation2 + $0x3a]]
    %v333 = vstv %s332
    %v334 = vmul.f32 %v333, %v324
    %s335 = sld [smem:[#allocation2 + $0x3b]]
    %v336 = vstv %s335
    %v337 = vmul.f32 %v336, %v321
    %v338 = vadd.f32 %v334, %v337
    %v340 = vrot.slane %v338, 2
    %v342 = vadd.f32 %v331, %v340
    %s343 = sld [smem:[#allocation2 + $0x3c]]
    %v344 = vstv %s343
    %v345 = vmul.f32 %v344, %v324
    %s346 = sld [smem:[#allocation2 + $0x3d]]
    %v347 = vstv %s346
    %v348 = vmul.f32 %v347, %v321
    %v349 = vadd.f32 %v345, %v348
    %v351 = vrot.slane %v349, 4
    %v353 = vadd.f32 %v342, %v351
    %s354 = sld [smem:[#allocation2 + $0x3e]]
    %v355 = vstv %s354
    %v356 = vmul.f32 %v355, %v324
    %s357 = sld [smem:[#allocation2 + $0x3f]]
    %v358 = vstv %s357
    %v359 = vmul.f32 %v358, %v321
    %v360 = vadd.f32 %v356, %v359
    %v362 = vrot.slane %v360, 6
    %v364 = vadd.f32 %v353, %v362
    %s365 = sld [smem:[#allocation2 + $0x40]]
    %v366 = vstv %s365
    %v367 = vadd.f32 %v364, %v366
    %v368 = vmax.f32 %v367, 0.0
    %369 = vrot.lane.b32.xlu0 %v368, 2
    %v370 = vpop.permute.xlu0 %369
    %v371 = vmul.f32 %v370, %v36
    %s372 = sld [smem:[#allocation2 + $0x41]]
    %v373 = vstv %s372
    %v374 = vmul.f32 %v373, %v371
    %s375 = sld [smem:[#allocation2 + $0x42]]
    %v376 = vstv %s375
    %v377 = vmul.f32 %v376, %v368
    %v378 = vadd.f32 %v374, %v377
    %s379 = sld [smem:[#allocation2 + $0x43]]
    %v380 = vstv %s379
    %v381 = vadd.f32 %v378, %v380
    %v382 = vmax.f32 %v381, 0.0
    %s383 = sld [smem:[#allocation2 + $0x44]]
    %v384 = vstv %s383
    %v385 = vmul.f32 %v384, %v321
    %s386 = sld [smem:[#allocation2 + $0x45]]
    %v387 = vstv %s386
    %v388 = vmul.f32 %v387, %v321
    %v390 = vrot.slane %v388, 2
    %v392 = vadd.f32 %v385, %v390
    %s393 = sld [smem:[#allocation2 + $0x46]]
    %v394 = vstv %s393
    %v395 = vmul.f32 %v394, %v321
    %v397 = vrot.slane %v395, 4
    %v399 = vadd.f32 %v392, %v397
    %s400 = sld [smem:[#allocation2 + $0x47]]
    %v401 = vstv %s400
    %v402 = vmul.f32 %v401, %v321
    %v404 = vrot.slane %v402, 6
    %v406 = vadd.f32 %v399, %v404
    %s407 = sld [smem:[#allocation2 + $0x48]]
    %v408 = vstv %s407
    %v409 = vadd.f32 %v406, %v408
    %v410 = vadd.f32 %v382, %v409
    %v411 = vmax.f32 %v410, 0.0
    %v413 = vlaneseq
    %v414 = vshrl.u32 %v413, 7
    %v415 = vsub.s32 0, %v414
    %v416 = vrot.slane %v28, %v415
    %v418 = vmul.f32 %v411, %v416
    %v419 = vsel %vm89, %v418, 0.0
    %420 = vadd.xlane.f32.xlu0 %v419
    %v421 = vpop.xlane.xlu0 %420
    %s422 = sld [smem:[#allocation2 + $0x49]]
    %v423 = vstv %s422
    %v424 = vadd.f32 %v421, %v423
    %425 = vst [vmem:[%s3] sm:$0x3] %v424
    // Predicated region
    $region18: #{tcn_attention_forward.1} parent=1 // pred_check
      _
    $region19: #{tcn_attention_forward.1} parent=1 // pred_check_branch
      %427 = sbr.rel (0) target = $region21
    $region20: #{tcn_attention_forward.1} parent=1 // pred_region
      _
    $region21: #{tcn_attention_forward.1} parent=1 // pred_fallthru
      _
    // Predicated region
    $region22: #{tcn_attention_forward.1} parent=1 // pred_check
      _
    $region23: #{tcn_attention_forward.1} parent=1 // pred_check_branch
      %429 = sbr.rel (0) target = $region25
    $region24: #{tcn_attention_forward.1} parent=1 // pred_region
      _
    $region25: #{tcn_attention_forward.1} parent=1 // pred_fallthru
      _
    %430 = vsyncpa [#allocation3], 1

</llo_original>
